<compile_context>
chip_gen: v7x
topology: tpu7x:2x2x1
jax: 0.10.0
libtpu: 0.0.40
codegen_flags: <defaults>
</compile_context>

<pallas_src>
import numpy as np
import jax
import jax.numpy as jnp
from jax.experimental import pallas as pl
from jax.experimental.pallas import tpu as pltpu


# slab indices inside the stacked (12, R, 128) input
_P_TX, _P_TY, _P_TW, _P_TH, _P_CONF = 0, 1, 2, 3, 4
_G_TX, _G_TY, _G_TW, _G_TH, _G_CONF, _G_CLS, _MASK = 5, 6, 7, 8, 9, 10, 11
_N_SLABS = 12

_NEG_CLAMP = -100.0  # torch.nn.BCELoss clamps log terms at -100


# -----------------------------------------------------------------------------
# Pallas kernel: all loss reductions (MSE / BCE / CrossEntropy, reduction='sum')
# Output: (6,128) per-lane partial sums, rows = [x, y, w, h, conf, cls].
# -----------------------------------------------------------------------------
def _yolo_loss_kernel(cells_ref, pcls_ref, out_ref):
    r = pl.program_id(0)

    @pl.when(r == 0)
    def _init():
        out_ref[...] = jnp.zeros_like(out_ref)

    m = cells_ref[_MASK]                                   # (tR, 128), values in {0,1}

    # ---- coordinate MSE losses (rows 0..3): sum(((p - g) * m)^2) --------------
    for k in range(4):
        d = (cells_ref[_P_TX + k] - cells_ref[_G_TX + k]) * m
        out_ref[pl.ds(k, 1), :] += jnp.sum(d * d, axis=0, keepdims=True)

    # ---- objectness BCE (row 4), fused obj / 0.5*noobj pass -------------------
    # Exact because m in {0,1}: masked-out branch of each original BCE term is 0.
    pc = cells_ref[_P_CONF]
    gc = cells_ref[_G_CONF]
    log_p = jnp.maximum(jnp.log(pc), _NEG_CLAMP)
    log_1mp = jnp.maximum(jnp.log(1.0 - pc), _NEG_CLAMP)
    bce = -(gc * log_p + (1.0 - gc) * log_1mp)
    wgt = 0.5 + 0.5 * m
    out_ref[pl.ds(4, 1), :] += jnp.sum(wgt * bce, axis=0, keepdims=True)

    # ---- classification CE (row 5): over ALL cells with masked logits/targets
    # (matches the reference: background cells contribute log(C)).
    t = (cells_ref[_G_CLS] * m).astype(jnp.int32)          # (tR, 128)
    C = pcls_ref.shape[0]

    zmax = pcls_ref[0] * m
    for c in range(1, C):
        zmax = jnp.maximum(zmax, pcls_ref[c] * m)

    se = jnp.zeros_like(zmax)
    z_t = jnp.zeros_like(zmax)
    for c in range(C):
        zc = pcls_ref[c] * m
        se = se + jnp.exp(zc - zmax)
        z_t = z_t + jnp.where(t == c, zc, 0.0)

    lse = zmax + jnp.log(se)
    out_ref[pl.ds(5, 1), :] += jnp.sum(lse - z_t, axis=0, keepdims=True)


def _pick_block_rows(R, C, budget_bytes=8 << 20):
    """Largest row-block that keeps double-buffered inputs within ~budget."""
    per_row = (_N_SLABS + C) * 128 * 4 * 2        # f32, 2x for double-buffering
    max_rows = max(8, budget_bytes // per_row)
    if R <= max_rows:
        return R
    start = int(max_rows) - int(max_rows) % 8
    for tr in range(start, 0, -8):                # multiple of 8, divides R
        if R % tr == 0:
            return tr
    return R                                       # fallback: single resident block


def yolo_loss_pallas(pred_tx, pred_ty, pred_tw, pred_th, pred_conf, pred_cls,
                     gt_tx, gt_ty, gt_tw, gt_th, gt_conf, gt_cls, obj_mask):
    bs, nA, gs, _ = pred_tx.shape
    C = pred_cls.shape[-1]
    N = bs * nA * gs * gs
    assert N % 128 == 0, "cell count must be a multiple of the 128-lane width"
    R = N // 128

    def cell(a):
        return jnp.asarray(a, jnp.float32).reshape(R, 128)

    stacked = jnp.stack(
        [cell(pred_tx), cell(pred_ty), cell(pred_tw), cell(pred_th),
         cell(pred_conf),
         cell(gt_tx), cell(gt_ty), cell(gt_tw), cell(gt_th),
         cell(gt_conf), cell(gt_cls), cell(obj_mask)], axis=0)     # (12, R, 128)

    # TODO(synk): at production shapes (C~80) this class-major relayout should be
    # produced upstream in the prediction-head kernel instead of transposing here.
    pcls = jnp.transpose(jnp.asarray(pred_cls, jnp.float32),
                         (4, 0, 1, 2, 3)).reshape(C, R, 128)

    tR = _pick_block_rows(R, C)
    grid = (R // tR,)

    out = pl.pallas_call(
        _yolo_loss_kernel,
        grid=grid,
        in_specs=[pl.BlockSpec((_N_SLABS, tR, 128), lambda r: (0, r, 0)),
                  pl.BlockSpec((C, tR, 128), lambda r: (0, r, 0))],
        out_specs=pl.BlockSpec((6, 128), lambda r: (0, 0)),
        out_shape=jax.ShapeDtypeStruct((6, 128), jnp.float32),
        compiler_params=pltpu.CompilerParams(
            dimension_semantics=("arbitrary",)),   # reduction axis -> accumulator
    )(stacked, pcls)

    sums = jnp.sum(out, axis=1)                    # tiny (6,128)->(6,) lane sum in XLA
    return {'x': sums[0], 'y': sums[1], 'w': sums[2], 'h': sums[3],
            'conf': sums[4], 'cls': sums[5]}


# -----------------------------------------------------------------------------
# Host-side glue replicating darknet.py helpers and the target-assignment loop
# -----------------------------------------------------------------------------
def _xywh2xyxy(b):
    x, y, w, h = b[..., 0], b[..., 1], b[..., 2], b[..., 3]
    return np.stack([x - w / 2, y - h / 2, x + w / 2, y + h / 2], axis=-1)


def _iou(boxes, box):
    x1 = np.maximum(boxes[:, 0], box[0]); y1 = np.maximum(boxes[:, 1], box[1])
    x2 = np.minimum(boxes[:, 2], box[2]); y2 = np.minimum(boxes[:, 3], box[3])
    inter = np.clip(x2 - x1, 0.0, None) * np.clip(y2 - y1, 0.0, None)
    a1 = (boxes[:, 2] - boxes[:, 0]) * (boxes[:, 3] - boxes[:, 1])
    a2 = (box[2] - box[0]) * (box[3] - box[1])
    return inter / (a1 + a2 - inter + 1e-16)


class YOLOLoss:
    """JAX/Pallas port of darknet.YOLOLoss (forward only)."""

    def __init__(self, shape, scaled_anchors, num_classes, pred, pred_t):
        self.bs, self.nA, self.gs = int(shape[0]), int(shape[1]), int(shape[2])
        self.scaled_anchors = np.asarray(scaled_anchors, np.float32)
        self.num_classes = int(num_classes)
        self.predictions = np.asarray(pred, np.float32)          # (bs,nA,gs,gs,5+C)
        self.pred_conf = self.predictions[..., 4]
        self.pred_cls = self.predictions[..., 5:]
        self.pred_tx, self.pred_ty, self.pred_tw, self.pred_th = \
            [np.asarray(p, np.float32) for p in pred_t]

    def forward(self, x, y_true):
        # TODO(synk): the ragged, data-dependent target assignment (scatter with
        # overwrite semantics over variable-length GT lists) stays host-side;
        # the loss reductions (the hot path) run in the Pallas kernel.
        bs, nA, gs = self.bs, self.nA, self.gs
        gt_tx = np.zeros((bs, nA, gs, gs), np.float32)
        gt_ty = np.zeros((bs, nA, gs, gs), np.float32)
        gt_tw = np.zeros((bs, nA, gs, gs), np.float32)
        gt_th = np.zeros((bs, nA, gs, gs), np.float32)
        gt_conf = np.zeros((bs, nA, gs, gs), np.float32)
        gt_cls = np.zeros((bs, nA, gs, gs), np.float32)
        obj_mask = np.zeros((bs, nA, gs, gs), np.float32)

        for idx in range(bs):
            for y_true_one in np.asarray(y_true[idx], np.float32):
                gt_bbox = y_true_one[:4] * gs
                gt_cls_label = int(y_true_one[4])
                gt_xc, gt_yc, gt_w, gt_h = gt_bbox
                gt_i = int(gt_xc)          # .long() truncation (values >= 0)
                gt_j = int(gt_yc)
                pred_bbox = self.predictions[idx, :, gt_j, gt_i, :4]
                ious = _iou(_xywh2xyxy(pred_bbox), _xywh2xyxy(gt_bbox))
                best_a = int(np.argmax(ious))
                best_iou = float(ious[best_a])
                w, h = self.scaled_anchors[best_a]
                gt_tw[idx, best_a, gt_j, gt_i] = np.log(gt_w / w)
                gt_th[idx, best_a, gt_j, gt_i] = np.log(gt_h / h)
                gt_tx[idx, best_a, gt_j, gt_i] = gt_xc - float(gt_i)
                gt_ty[idx, best_a, gt_j, gt_i] = gt_yc - float(gt_j)
                gt_conf[idx, best_a, gt_j, gt_i] = best_iou
                gt_cls[idx, best_a, gt_j, gt_i] = gt_cls_label
                obj_mask[idx, best_a, gt_j, gt_i] = 1.0

        return yolo_loss_pallas(self.pred_tx, self.pred_ty, self.pred_tw,
                                self.pred_th, self.pred_conf, self.pred_cls,
                                gt_tx, gt_ty, gt_tw, gt_th, gt_conf, gt_cls,
                                obj_mask)


if __name__ == "__main__":
    bs, nA, gs, C = 2, 3, 16, 8
    n_gt = 3
    key = jax.random.PRNGKey(0)
    k_raw, k_box, k_cls = jax.random.split(key, 3)

    raw = np.asarray(jax.random.normal(k_raw, (bs, nA, gs, gs, 5 + C),
                                       dtype=jnp.float32))
    scaled_anchors = np.array([[1.5, 2.0], [3.0, 3.5], [4.5, 5.0]], np.float32)

    def sigmoid(v):
        return 1.0 / (1.0 + np.exp(-v))

    grid_x = np.arange(gs, dtype=np.float32).reshape(1, 1, 1, gs)
    grid_y = np.arange(gs, dtype=np.float32).reshape(1, 1, gs, 1)
    aw = scaled_anchors[:, 0].reshape(1, nA, 1, 1)
    ah = scaled_anchors[:, 1].reshape(1, nA, 1, 1)

    pred_tx, pred_ty = raw[..., 0], raw[..., 1]
    pred_tw, pred_th = raw[..., 2], raw[..., 3]

    pred = np.empty((bs, nA, gs, gs, 5 + C), np.float32)
    pred[..., 0] = sigmoid(pred_tx) + grid_x          # decoded x-center
    pred[..., 1] = sigmoid(pred_ty) + grid_y          # decoded y-center
    pred[..., 2] = aw * np.exp(pred_tw)               # decoded w
    pred[..., 3] = ah * np.exp(pred_th)               # decoded h
    pred[..., 4] = sigmoid(raw[..., 4])               # objectness (probability)
    pred[..., 5:] = raw[..., 5:]                      # class logits

    # ground truth: (bs, n_gt, 5) = [xc, yc, w, h, cls], coords normalized to [0,1]
    box_u = np.asarray(jax.random.uniform(k_box, (bs, n_gt, 4), dtype=jnp.float32))
    cls_u = np.asarray(jax.random.randint(k_cls, (bs, n_gt, 1), 0, C)).astype(np.float32)
    xy = 0.05 + 0.9 * box_u[..., :2]
    wh = 0.05 + 0.45 * box_u[..., 2:]
    y_true = np.concatenate([xy, wh, cls_u], axis=-1)

    model = YOLOLoss((bs, nA, gs), scaled_anchors, C, pred,
                     (pred_tx, pred_ty, pred_tw, pred_th))
    # NCHW feature map (unused by the reference forward, passed for signature parity)
    x_dummy = jnp.zeros((bs, nA * (5 + C), gs, gs), jnp.float32)

    loss = model.forward(x_dummy, y_true)
    loss = jax.tree_util.tree_map(jax.block_until_ready, loss)

    vals = np.array([float(loss[k]) for k in ('x', 'y', 'w', 'h', 'cls', 'conf')])
    assert np.all(np.isfinite(vals))
    print("KERNEL_OK")
</pallas_src>

<mosaic_0001>
module attributes {stable_mosaic.version = 11 : i64} {
  func.func @_yolo_loss_kernel(%arg0: i32, %arg1: memref<12x12x128xf32, #tpu.memory_space<vmem>>, %arg2: memref<8x12x128xf32, #tpu.memory_space<vmem>>, %arg3: memref<6x128xf32, #tpu.memory_space<vmem>>) attributes {dimension_semantics = [#tpu.dimension_semantics<arbitrary>], iteration_bounds = array<i64: 1>, scalar_prefetch = 0 : i64, scratch_operands = 0 : i64, tpu.core_type = #tpu.core_type<tc>, window_params = [{transform_indices = @transform_0, window_bounds = array<i64: 12, 12, 128>}, {transform_indices = @transform_1, window_bounds = array<i64: 8, 12, 128>}, {pipeline_mode = #tpu.pipeline_mode<synchronous>, transform_indices = @transform_2, window_bounds = array<i64: 6, 128>}]} {
    %c0_i32 = arith.constant 0 : i32
    %0 = arith.cmpi eq, %arg0, %c0_i32 : i32
    %1 = arith.extui %0 : i1 to i32
    %c0_i32_0 = arith.constant 0 : i32
    %2 = arith.cmpi ne, %1, %c0_i32_0 : i32
    scf.if %2 {
      %cst_120 = arith.constant 0.000000e+00 : f32
      %215 = vector.broadcast %cst_120 : f32 to vector<6x128xf32>
      %c0_121 = arith.constant 0 : index
      %c0_122 = arith.constant 0 : index
      %216 = vector.load %arg3[%c0_121, %c0_122] : memref<6x128xf32, #tpu.memory_space<vmem>>, vector<6x128xf32>
      tpu.vector_store %arg3[%c0_121, %c0_122], %215 {strides = array<i32>} : memref<6x128xf32, #tpu.memory_space<vmem>>, vector<6x128xf32>,
    } else {
    }
    %c11 = arith.constant 11 : index
    %c0 = arith.constant 0 : index
    %c0_1 = arith.constant 0 : index
    %3 = vector.load %arg1[%c11, %c0, %c0_1] : memref<12x12x128xf32, #tpu.memory_space<vmem>>, vector<1x12x128xf32>
    %4 = vector.shape_cast %3 : vector<1x12x128xf32> to vector<12x128xf32>
    %c0_2 = arith.constant 0 : index
    %c0_3 = arith.constant 0 : index
    %c0_4 = arith.constant 0 : index
    %5 = vector.load %arg1[%c0_2, %c0_3, %c0_4] : memref<12x12x128xf32, #tpu.memory_space<vmem>>, vector<1x12x128xf32>
    %6 = vector.shape_cast %5 : vector<1x12x128xf32> to vector<12x128xf32>
    %c5 = arith.constant 5 : index
    %c0_5 = arith.constant 0 : index
    %c0_6 = arith.constant 0 : index
    %7 = vector.load %arg1[%c5, %c0_5, %c0_6] : memref<12x12x128xf32, #tpu.memory_space<vmem>>, vector<1x12x128xf32>
    %8 = vector.shape_cast %7 : vector<1x12x128xf32> to vector<12x128xf32>
    %9 = arith.subf %6, %8 : vector<12x128xf32>
    %10 = arith.mulf %9, %4 : vector<12x128xf32>
    %c0_7 = arith.constant 0 : index
    %c0_8 = arith.constant 0 : index
    %11 = vector.load %arg3[%c0_7, %c0_8] : memref<6x128xf32, #tpu.memory_space<vmem>>, vector<1x128xf32>
    %12 = arith.mulf %10, %10 : vector<12x128xf32>
    %cst = arith.constant dense<0.000000e+00> : vector<128xf32>
    %13 = vector.multi_reduction <add>, %12, %cst [0] : vector<12x128xf32> to vector<128xf32>
    %14 = vector.shape_cast %13 : vector<128xf32> to vector<1x128xf32>
    %15 = arith.addf %11, %14 : vector<1x128xf32>
    %c0_9 = arith.constant 0 : index
    %c0_10 = arith.constant 0 : index
    %16 = vector.load %arg3[%c0_9, %c0_10] : memref<6x128xf32, #tpu.memory_space<vmem>>, vector<1x128xf32>
    tpu.vector_store %arg3[%c0_9, %c0_10], %15 {strides = array<i32>} : memref<6x128xf32, #tpu.memory_space<vmem>>, vector<1x128xf32>,
    %c1 = arith.constant 1 : index
    %c0_11 = arith.constant 0 : index
    %c0_12 = arith.constant 0 : index
    %17 = vector.load %arg1[%c1, %c0_11, %c0_12] : memref<12x12x128xf32, #tpu.memory_space<vmem>>, vector<1x12x128xf32>
    %18 = vector.shape_cast %17 : vector<1x12x128xf32> to vector<12x128xf32>
    %c6 = arith.constant 6 : index
    %c0_13 = arith.constant 0 : index
    %c0_14 = arith.constant 0 : index
    %19 = vector.load %arg1[%c6, %c0_13, %c0_14] : memref<12x12x128xf32, #tpu.memory_space<vmem>>, vector<1x12x128xf32>
    %20 = vector.shape_cast %19 : vector<1x12x128xf32> to vector<12x128xf32>
    %21 = arith.subf %18, %20 : vector<12x128xf32>
    %22 = arith.mulf %21, %4 : vector<12x128xf32>
    %c1_15 = arith.constant 1 : index
    %c0_16 = arith.constant 0 : index
    %23 = vector.load %arg3[%c1_15, %c0_16] : memref<6x128xf32, #tpu.memory_space<vmem>>, vector<1x128xf32>
    %24 = arith.mulf %22, %22 : vector<12x128xf32>
    %cst_17 = arith.constant dense<0.000000e+00> : vector<128xf32>
    %25 = vector.multi_reduction <add>, %24, %cst_17 [0] : vector<12x128xf32> to vector<128xf32>
    %26 = vector.shape_cast %25 : vector<128xf32> to vector<1x128xf32>
    %27 = arith.addf %23, %26 : vector<1x128xf32>
    %c1_18 = arith.constant 1 : index
    %c0_19 = arith.constant 0 : index
    %28 = vector.load %arg3[%c1_18, %c0_19] : memref<6x128xf32, #tpu.memory_space<vmem>>, vector<1x128xf32>
    tpu.vector_store %arg3[%c1_18, %c0_19], %27 {strides = array<i32>} : memref<6x128xf32, #tpu.memory_space<vmem>>, vector<1x128xf32>,
    %c2 = arith.constant 2 : index
    %c0_20 = arith.constant 0 : index
    %c0_21 = arith.constant 0 : index
    %29 = vector.load %arg1[%c2, %c0_20, %c0_21] : memref<12x12x128xf32, #tpu.memory_space<vmem>>, vector<1x12x128xf32>
    %30 = vector.shape_cast %29 : vector<1x12x128xf32> to vector<12x128xf32>
    %c7 = arith.constant 7 : index
    %c0_22 = arith.constant 0 : index
    %c0_23 = arith.constant 0 : index
    %31 = vector.load %arg1[%c7, %c0_22, %c0_23] : memref<12x12x128xf32, #tpu.memory_space<vmem>>, vector<1x12x128xf32>
    %32 = vector.shape_cast %31 : vector<1x12x128xf32> to vector<12x128xf32>
    %33 = arith.subf %30, %32 : vector<12x128xf32>
    %34 = arith.mulf %33, %4 : vector<12x128xf32>
    %c2_24 = arith.constant 2 : index
    %c0_25 = arith.constant 0 : index
    %35 = vector.load %arg3[%c2_24, %c0_25] : memref<6x128xf32, #tpu.memory_space<vmem>>, vector<1x128xf32>
    %36 = arith.mulf %34, %34 : vector<12x128xf32>
    %cst_26 = arith.constant dense<0.000000e+00> : vector<128xf32>
    %37 = vector.multi_reduction <add>, %36, %cst_26 [0] : vector<12x128xf32> to vector<128xf32>
    %38 = vector.shape_cast %37 : vector<128xf32> to vector<1x128xf32>
    %39 = arith.addf %35, %38 : vector<1x128xf32>
    %c2_27 = arith.constant 2 : index
    %c0_28 = arith.constant 0 : index
    %40 = vector.load %arg3[%c2_27, %c0_28] : memref<6x128xf32, #tpu.memory_space<vmem>>, vector<1x128xf32>
    tpu.vector_store %arg3[%c2_27, %c0_28], %39 {strides = array<i32>} : memref<6x128xf32, #tpu.memory_space<vmem>>, vector<1x128xf32>,
    %c3 = arith.constant 3 : index
    %c0_29 = arith.constant 0 : index
    %c0_30 = arith.constant 0 : index
    %41 = vector.load %arg1[%c3, %c0_29, %c0_30] : memref<12x12x128xf32, #tpu.memory_space<vmem>>, vector<1x12x128xf32>
    %42 = vector.shape_cast %41 : vector<1x12x128xf32> to vector<12x128xf32>
    %c8 = arith.constant 8 : index
    %c0_31 = arith.constant 0 : index
    %c0_32 = arith.constant 0 : index
    %43 = vector.load %arg1[%c8, %c0_31, %c0_32] : memref<12x12x128xf32, #tpu.memory_space<vmem>>, vector<1x12x128xf32>
    %44 = vector.shape_cast %43 : vector<1x12x128xf32> to vector<12x128xf32>
    %45 = arith.subf %42, %44 : vector<12x128xf32>
    %46 = arith.mulf %45, %4 : vector<12x128xf32>
    %c3_33 = arith.constant 3 : index
    %c0_34 = arith.constant 0 : index
    %47 = vector.load %arg3[%c3_33, %c0_34] : memref<6x128xf32, #tpu.memory_space<vmem>>, vector<1x128xf32>
    %48 = arith.mulf %46, %46 : vector<12x128xf32>
    %cst_35 = arith.constant dense<0.000000e+00> : vector<128xf32>
    %49 = vector.multi_reduction <add>, %48, %cst_35 [0] : vector<12x128xf32> to vector<128xf32>
    %50 = vector.shape_cast %49 : vector<128xf32> to vector<1x128xf32>
    %51 = arith.addf %47, %50 : vector<1x128xf32>
    %c3_36 = arith.constant 3 : index
    %c0_37 = arith.constant 0 : index
    %52 = vector.load %arg3[%c3_36, %c0_37] : memref<6x128xf32, #tpu.memory_space<vmem>>, vector<1x128xf32>
    tpu.vector_store %arg3[%c3_36, %c0_37], %51 {strides = array<i32>} : memref<6x128xf32, #tpu.memory_space<vmem>>, vector<1x128xf32>,
    %c4 = arith.constant 4 : index
    %c0_38 = arith.constant 0 : index
    %c0_39 = arith.constant 0 : index
    %53 = vector.load %arg1[%c4, %c0_38, %c0_39] : memref<12x12x128xf32, #tpu.memory_space<vmem>>, vector<1x12x128xf32>
    %54 = vector.shape_cast %53 : vector<1x12x128xf32> to vector<12x128xf32>
    %c9 = arith.constant 9 : index
    %c0_40 = arith.constant 0 : index
    %c0_41 = arith.constant 0 : index
    %55 = vector.load %arg1[%c9, %c0_40, %c0_41] : memref<12x12x128xf32, #tpu.memory_space<vmem>>, vector<1x12x128xf32>
    %56 = vector.shape_cast %55 : vector<1x12x128xf32> to vector<12x128xf32>
    %57 = math.log %54 : vector<12x128xf32>
    %cst_42 = arith.constant -1.000000e+02 : f32
    %58 = vector.broadcast %cst_42 : f32 to vector<12x128xf32>
    %59 = arith.maximumf %57, %58 : vector<12x128xf32>
    %cst_43 = arith.constant 1.000000e+00 : f32
    %60 = vector.broadcast %cst_43 : f32 to vector<12x128xf32>
    %61 = arith.subf %60, %54 : vector<12x128xf32>
    %62 = math.log %61 : vector<12x128xf32>
    %cst_44 = arith.constant -1.000000e+02 : f32
    %63 = vector.broadcast %cst_44 : f32 to vector<12x128xf32>
    %64 = arith.maximumf %62, %63 : vector<12x128xf32>
    %65 = arith.mulf %56, %59 : vector<12x128xf32>
    %cst_45 = arith.constant 1.000000e+00 : f32
    %66 = vector.broadcast %cst_45 : f32 to vector<12x128xf32>
    %67 = arith.subf %66, %56 : vector<12x128xf32>
    %68 = arith.mulf %67, %64 : vector<12x128xf32>
    %69 = arith.addf %65, %68 : vector<12x128xf32>
    %cst_46 = arith.constant 0.000000e+00 : f32
    %70 = vector.broadcast %cst_46 : f32 to vector<12x128xf32>
    %71 = arith.subf %70, %69 : vector<12x128xf32>
    %cst_47 = arith.constant 5.000000e-01 : f32
    %72 = vector.broadcast %cst_47 : f32 to vector<12x128xf32>
    %73 = arith.mulf %72, %4 : vector<12x128xf32>
    %cst_48 = arith.constant 5.000000e-01 : f32
    %74 = vector.broadcast %cst_48 : f32 to vector<12x128xf32>
    %75 = arith.addf %74, %73 : vector<12x128xf32>
    %c4_49 = arith.constant 4 : index
    %c0_50 = arith.constant 0 : index
    %76 = vector.load %arg3[%c4_49, %c0_50] : memref<6x128xf32, #tpu.memory_space<vmem>>, vector<1x128xf32>
    %77 = arith.mulf %75, %71 : vector<12x128xf32>
    %cst_51 = arith.constant dense<0.000000e+00> : vector<128xf32>
    %78 = vector.multi_reduction <add>, %77, %cst_51 [0] : vector<12x128xf32> to vector<128xf32>
    %79 = vector.shape_cast %78 : vector<128xf32> to vector<1x128xf32>
    %80 = arith.addf %76, %79 : vector<1x128xf32>
    %c4_52 = arith.constant 4 : index
    %c0_53 = arith.constant 0 : index
    %81 = vector.load %arg3[%c4_52, %c0_53] : memref<6x128xf32, #tpu.memory_space<vmem>>, vector<1x128xf32>
    tpu.vector_store %arg3[%c4_52, %c0_53], %80 {strides = array<i32>} : memref<6x128xf32, #tpu.memory_space<vmem>>, vector<1x128xf32>,
    %c10 = arith.constant 10 : index
    %c0_54 = arith.constant 0 : index
    %c0_55 = arith.constant 0 : index
    %82 = vector.load %arg1[%c10, %c0_54, %c0_55] : memref<12x12x128xf32, #tpu.memory_space<vmem>>, vector<1x12x128xf32>
    %83 = vector.shape_cast %82 : vector<1x12x128xf32> to vector<12x128xf32>
    %84 = arith.mulf %83, %4 : vector<12x128xf32>
    %85 = arith.fptosi %84 : vector<12x128xf32> to vector<12x128xi32>
    %c0_56 = arith.constant 0 : index
    %c0_57 = arith.constant 0 : index
    %c0_58 = arith.constant 0 : index
    %86 = vector.load %arg2[%c0_56, %c0_57, %c0_58] : memref<8x12x128xf32, #tpu.memory_space<vmem>>, vector<1x12x128xf32>
    %87 = vector.shape_cast %86 : vector<1x12x128xf32> to vector<12x128xf32>
    %88 = arith.mulf %87, %4 : vector<12x128xf32>
    %c1_59 = arith.constant 1 : index
    %c0_60 = arith.constant 0 : index
    %c0_61 = arith.constant 0 : index
    %89 = vector.load %arg2[%c1_59, %c0_60, %c0_61] : memref<8x12x128xf32, #tpu.memory_space<vmem>>, vector<1x12x128xf32>
    %90 = vector.shape_cast %89 : vector<1x12x128xf32> to vector<12x128xf32>
    %91 = arith.mulf %90, %4 : vector<12x128xf32>
    %92 = arith.maximumf %88, %91 : vector<12x128xf32>
    %c2_62 = arith.constant 2 : index
    %c0_63 = arith.constant 0 : index
    %c0_64 = arith.constant 0 : index
    %93 = vector.load %arg2[%c2_62, %c0_63, %c0_64] : memref<8x12x128xf32, #tpu.memory_space<vmem>>, vector<1x12x128xf32>
    %94 = vector.shape_cast %93 : vector<1x12x128xf32> to vector<12x128xf32>
    %95 = arith.mulf %94, %4 : vector<12x128xf32>
    %96 = arith.maximumf %92, %95 : vector<12x128xf32>
    %c3_65 = arith.constant 3 : index
    %c0_66 = arith.constant 0 : index
    %c0_67 = arith.constant 0 : index
    %97 = vector.load %arg2[%c3_65, %c0_66, %c0_67] : memref<8x12x128xf32, #tpu.memory_space<vmem>>, vector<1x12x128xf32>
    %98 = vector.shape_cast %97 : vector<1x12x128xf32> to vector<12x128xf32>
    %99 = arith.mulf %98, %4 : vector<12x128xf32>
    %100 = arith.maximumf %96, %99 : vector<12x128xf32>
    %c4_68 = arith.constant 4 : index
    %c0_69 = arith.constant 0 : index
    %c0_70 = arith.constant 0 : index
    %101 = vector.load %arg2[%c4_68, %c0_69, %c0_70] : memref<8x12x128xf32, #tpu.memory_space<vmem>>, vector<1x12x128xf32>
    %102 = vector.shape_cast %101 : vector<1x12x128xf32> to vector<12x128xf32>
    %103 = arith.mulf %102, %4 : vector<12x128xf32>
    %104 = arith.maximumf %100, %103 : vector<12x128xf32>
    %c5_71 = arith.constant 5 : index
    %c0_72 = arith.constant 0 : index
    %c0_73 = arith.constant 0 : index
    %105 = vector.load %arg2[%c5_71, %c0_72, %c0_73] : memref<8x12x128xf32, #tpu.memory_space<vmem>>, vector<1x12x128xf32>
    %106 = vector.shape_cast %105 : vector<1x12x128xf32> to vector<12x128xf32>
    %107 = arith.mulf %106, %4 : vector<12x128xf32>
    %108 = arith.maximumf %104, %107 : vector<12x128xf32>
    %c6_74 = arith.constant 6 : index
    %c0_75 = arith.constant 0 : index
    %c0_76 = arith.constant 0 : index
    %109 = vector.load %arg2[%c6_74, %c0_75, %c0_76] : memref<8x12x128xf32, #tpu.memory_space<vmem>>, vector<1x12x128xf32>
    %110 = vector.shape_cast %109 : vector<1x12x128xf32> to vector<12x128xf32>
    %111 = arith.mulf %110, %4 : vector<12x128xf32>
    %112 = arith.maximumf %108, %111 : vector<12x128xf32>
    %c7_77 = arith.constant 7 : index
    %c0_78 = arith.constant 0 : index
    %c0_79 = arith.constant 0 : index
    %113 = vector.load %arg2[%c7_77, %c0_78, %c0_79] : memref<8x12x128xf32, #tpu.memory_space<vmem>>, vector<1x12x128xf32>
    %114 = vector.shape_cast %113 : vector<1x12x128xf32> to vector<12x128xf32>
    %115 = arith.mulf %114, %4 : vector<12x128xf32>
    %116 = arith.maximumf %112, %115 : vector<12x128xf32>
    %cst_80 = arith.constant 0.000000e+00 : f32
    %117 = vector.broadcast %cst_80 : f32 to vector<12x128xf32>
    %cst_81 = arith.constant 0.000000e+00 : f32
    %118 = vector.broadcast %cst_81 : f32 to vector<12x128xf32>
    %c0_82 = arith.constant 0 : index
    %c0_83 = arith.constant 0 : index
    %c0_84 = arith.constant 0 : index
    %119 = vector.load %arg2[%c0_82, %c0_83, %c0_84] : memref<8x12x128xf32, #tpu.memory_space<vmem>>, vector<1x12x128xf32>
    %120 = vector.shape_cast %119 : vector<1x12x128xf32> to vector<12x128xf32>
    %121 = arith.mulf %120, %4 : vector<12x128xf32>
    %122 = arith.subf %121, %116 : vector<12x128xf32>
    %123 = math.exp %122 : vector<12x128xf32>
    %124 = arith.addf %117, %123 : vector<12x128xf32>
    %c0_i32_85 = arith.constant 0 : i32
    %125 = vector.broadcast %c0_i32_85 : i32 to vector<12x128xi32>
    %126 = arith.cmpi eq, %85, %125 : vector<12x128xi32>
    %cst_86 = arith.constant 0.000000e+00 : f32
    %127 = vector.broadcast %cst_86 : f32 to vector<12x128xf32>
    %128 = arith.select %126, %121, %127 : vector<12x128xi1>, vector<12x128xf32>
    %129 = arith.addf %118, %128 : vector<12x128xf32>
    %c1_87 = arith.constant 1 : index
    %c0_88 = arith.constant 0 : index
    %c0_89 = arith.constant 0 : index
    %130 = vector.load %arg2[%c1_87, %c0_88, %c0_89] : memref<8x12x128xf32, #tpu.memory_space<vmem>>, vector<1x12x128xf32>
    %131 = vector.shape_cast %130 : vector<1x12x128xf32> to vector<12x128xf32>
    %132 = arith.mulf %131, %4 : vector<12x128xf32>
    %133 = arith.subf %132, %116 : vector<12x128xf32>
    %134 = math.exp %133 : vector<12x128xf32>
    %135 = arith.addf %124, %134 : vector<12x128xf32>
    %c1_i32 = arith.constant 1 : i32
    %136 = vector.broadcast %c1_i32 : i32 to vector<12x128xi32>
    %137 = arith.cmpi eq, %85, %136 : vector<12x128xi32>
    %cst_90 = arith.constant 0.000000e+00 : f32
    %138 = vector.broadcast %cst_90 : f32 to vector<12x128xf32>
    %139 = arith.select %137, %132, %138 : vector<12x128xi1>, vector<12x128xf32>
    %140 = arith.addf %129, %139 : vector<12x128xf32>
    %c2_91 = arith.constant 2 : index
    %c0_92 = arith.constant 0 : index
    %c0_93 = arith.constant 0 : index
    %141 = vector.load %arg2[%c2_91, %c0_92, %c0_93] : memref<8x12x128xf32, #tpu.memory_space<vmem>>, vector<1x12x128xf32>
    %142 = vector.shape_cast %141 : vector<1x12x128xf32> to vector<12x128xf32>
    %143 = arith.mulf %142, %4 : vector<12x128xf32>
    %144 = arith.subf %143, %116 : vector<12x128xf32>
    %145 = math.exp %144 : vector<12x128xf32>
    %146 = arith.addf %135, %145 : vector<12x128xf32>
    %c2_i32 = arith.constant 2 : i32
    %147 = vector.broadcast %c2_i32 : i32 to vector<12x128xi32>
    %148 = arith.cmpi eq, %85, %147 : vector<12x128xi32>
    %cst_94 = arith.constant 0.000000e+00 : f32
    %149 = vector.broadcast %cst_94 : f32 to vector<12x128xf32>
    %150 = arith.select %148, %143, %149 : vector<12x128xi1>, vector<12x128xf32>
    %151 = arith.addf %140, %150 : vector<12x128xf32>
    %c3_95 = arith.constant 3 : index
    %c0_96 = arith.constant 0 : index
    %c0_97 = arith.constant 0 : index
    %152 = vector.load %arg2[%c3_95, %c0_96, %c0_97] : memref<8x12x128xf32, #tpu.memory_space<vmem>>, vector<1x12x128xf32>
    %153 = vector.shape_cast %152 : vector<1x12x128xf32> to vector<12x128xf32>
    %154 = arith.mulf %153, %4 : vector<12x128xf32>
    %155 = arith.subf %154, %116 : vector<12x128xf32>
    %156 = math.exp %155 : vector<12x128xf32>
    %157 = arith.addf %146, %156 : vector<12x128xf32>
    %c3_i32 = arith.constant 3 : i32
    %158 = vector.broadcast %c3_i32 : i32 to vector<12x128xi32>
    %159 = arith.cmpi eq, %85, %158 : vector<12x128xi32>
    %cst_98 = arith.constant 0.000000e+00 : f32
    %160 = vector.broadcast %cst_98 : f32 to vector<12x128xf32>
    %161 = arith.select %159, %154, %160 : vector<12x128xi1>, vector<12x128xf32>
    %162 = arith.addf %151, %161 : vector<12x128xf32>
    %c4_99 = arith.constant 4 : index
    %c0_100 = arith.constant 0 : index
    %c0_101 = arith.constant 0 : index
    %163 = vector.load %arg2[%c4_99, %c0_100, %c0_101] : memref<8x12x128xf32, #tpu.memory_space<vmem>>, vector<1x12x128xf32>
    %164 = vector.shape_cast %163 : vector<1x12x128xf32> to vector<12x128xf32>
    %165 = arith.mulf %164, %4 : vector<12x128xf32>
    %166 = arith.subf %165, %116 : vector<12x128xf32>
    %167 = math.exp %166 : vector<12x128xf32>
    %168 = arith.addf %157, %167 : vector<12x128xf32>
    %c4_i32 = arith.constant 4 : i32
    %169 = vector.broadcast %c4_i32 : i32 to vector<12x128xi32>
    %170 = arith.cmpi eq, %85, %169 : vector<12x128xi32>
    %cst_102 = arith.constant 0.000000e+00 : f32
    %171 = vector.broadcast %cst_102 : f32 to vector<12x128xf32>
    %172 = arith.select %170, %165, %171 : vector<12x128xi1>, vector<12x128xf32>
    %173 = arith.addf %162, %172 : vector<12x128xf32>
    %c5_103 = arith.constant 5 : index
    %c0_104 = arith.constant 0 : index
    %c0_105 = arith.constant 0 : index
    %174 = vector.load %arg2[%c5_103, %c0_104, %c0_105] : memref<8x12x128xf32, #tpu.memory_space<vmem>>, vector<1x12x128xf32>
    %175 = vector.shape_cast %174 : vector<1x12x128xf32> to vector<12x128xf32>
    %176 = arith.mulf %175, %4 : vector<12x128xf32>
    %177 = arith.subf %176, %116 : vector<12x128xf32>
    %178 = math.exp %177 : vector<12x128xf32>
    %179 = arith.addf %168, %178 : vector<12x128xf32>
    %c5_i32 = arith.constant 5 : i32
    %180 = vector.broadcast %c5_i32 : i32 to vector<12x128xi32>
    %181 = arith.cmpi eq, %85, %180 : vector<12x128xi32>
    %cst_106 = arith.constant 0.000000e+00 : f32
    %182 = vector.broadcast %cst_106 : f32 to vector<12x128xf32>
    %183 = arith.select %181, %176, %182 : vector<12x128xi1>, vector<12x128xf32>
    %184 = arith.addf %173, %183 : vector<12x128xf32>
    %c6_107 = arith.constant 6 : index
    %c0_108 = arith.constant 0 : index
    %c0_109 = arith.constant 0 : index
    %185 = vector.load %arg2[%c6_107, %c0_108, %c0_109] : memref<8x12x128xf32, #tpu.memory_space<vmem>>, vector<1x12x128xf32>
    %186 = vector.shape_cast %185 : vector<1x12x128xf32> to vector<12x128xf32>
    %187 = arith.mulf %186, %4 : vector<12x128xf32>
    %188 = arith.subf %187, %116 : vector<12x128xf32>
    %189 = math.exp %188 : vector<12x128xf32>
    %190 = arith.addf %179, %189 : vector<12x128xf32>
    %c6_i32 = arith.constant 6 : i32
    %191 = vector.broadcast %c6_i32 : i32 to vector<12x128xi32>
    %192 = arith.cmpi eq, %85, %191 : vector<12x128xi32>
    %cst_110 = arith.constant 0.000000e+00 : f32
    %193 = vector.broadcast %cst_110 : f32 to vector<12x128xf32>
    %194 = arith.select %192, %187, %193 : vector<12x128xi1>, vector<12x128xf32>
    %195 = arith.addf %184, %194 : vector<12x128xf32>
    %c7_111 = arith.constant 7 : index
    %c0_112 = arith.constant 0 : index
    %c0_113 = arith.constant 0 : index
    %196 = vector.load %arg2[%c7_111, %c0_112, %c0_113] : memref<8x12x128xf32, #tpu.memory_space<vmem>>, vector<1x12x128xf32>
    %197 = vector.shape_cast %196 : vector<1x12x128xf32> to vector<12x128xf32>
    %198 = arith.mulf %197, %4 : vector<12x128xf32>
    %199 = arith.subf %198, %116 : vector<12x128xf32>
    %200 = math.exp %199 : vector<12x128xf32>
    %201 = arith.addf %190, %200 : vector<12x128xf32>
    %c7_i32 = arith.constant 7 : i32
    %202 = vector.broadcast %c7_i32 : i32 to vector<12x128xi32>
    %203 = arith.cmpi eq, %85, %202 : vector<12x128xi32>
    %cst_114 = arith.constant 0.000000e+00 : f32
    %204 = vector.broadcast %cst_114 : f32 to vector<12x128xf32>
    %205 = arith.select %203, %198, %204 : vector<12x128xi1>, vector<12x128xf32>
    %206 = arith.addf %195, %205 : vector<12x128xf32>
    %207 = math.log %201 : vector<12x128xf32>
    %208 = arith.addf %116, %207 : vector<12x128xf32>
    %c5_115 = arith.constant 5 : index
    %c0_116 = arith.constant 0 : index
    %209 = vector.load %arg3[%c5_115, %c0_116] : memref<6x128xf32, #tpu.memory_space<vmem>>, vector<1x128xf32>
    %210 = arith.subf %208, %206 : vector<12x128xf32>
    %cst_117 = arith.constant dense<0.000000e+00> : vector<128xf32>
    %211 = vector.multi_reduction <add>, %210, %cst_117 [0] : vector<12x128xf32> to vector<128xf32>
    %212 = vector.shape_cast %211 : vector<128xf32> to vector<1x128xf32>
    %213 = arith.addf %209, %212 : vector<1x128xf32>
    %c5_118 = arith.constant 5 : index
    %c0_119 = arith.constant 0 : index
    %214 = vector.load %arg3[%c5_118, %c0_119] : memref<6x128xf32, #tpu.memory_space<vmem>>, vector<1x128xf32>
    tpu.vector_store %arg3[%c5_118, %c0_119], %213 {strides = array<i32>} : memref<6x128xf32, #tpu.memory_space<vmem>>, vector<1x128xf32>,
    return
  }
  func.func @transform_0(%arg0: i32) -> (i32, i32, i32) {
    %c0_i32 = arith.constant 0 : i32
    %c0_i32_0 = arith.constant 0 : i32
    %c0_i32_1 = arith.constant 0 : i32
    return %c0_i32, %arg0, %c0_i32_0 : i32, i32, i32
  }
  func.func @transform_1(%arg0: i32) -> (i32, i32, i32) {
    %c0_i32 = arith.constant 0 : i32
    %c0_i32_0 = arith.constant 0 : i32
    %c0_i32_1 = arith.constant 0 : i32
    return %c0_i32, %arg0, %c0_i32_0 : i32, i32, i32
  }
  func.func @transform_2(%arg0: i32) -> (i32, i32) {
    %c0_i32 = arith.constant 0 : i32
    %c0_i32_0 = arith.constant 0 : i32
    %c0_i32_1 = arith.constant 0 : i32
    return %c0_i32, %c0_i32_0 : i32, i32
  }
}

</mosaic_0001>

<llo_original>
// kernel: tpu_custom_call.1
$region0: #{tpu_custom_call.1}
  #allocation0 [shape = 'u32[]', space=smem, size = 0x4, offset = 0x4, fixed_abs, tag = 'smem constant byte address 0x4 - core index']
  #allocation1 [shape = 'u32[144,128]{1,0:T(1,128)}', space=vmem, size = 0x12000, scoped, tag = 'internal scratch']
  %s0 = inlined_call_operand.vmem [shape: f32[12,12,128], index: 0, kind: input, shape index: {}]
  %s1 = inlined_call_operand.vmem [shape: f32[8,12,128], index: 1, kind: input, shape index: {}]
  %s2 = inlined_call_operand.hbm [shape: f32[6,128], index: 2, kind: output, shape index: {}]
  %s3 = sld [smem:[#allocation0]]
  $region22: #{tpu_custom_call.1} parent=0
    _
  %s5 = ssub.s32 1, %s3
  %s6 = scalar_select 0, %s5, %s3
  $region1: #{tpu_custom_call.1} parent=0
    #allocation2 [shape = 'u8[4096]{0}', space=vmem, size = 0x1000, scoped, tag = 'output window, operand 0, single buffered']
    #allocation3 [shape = 's32[1]{0}', space=sflag, size = 0x4, scoped, tag = 'scoped memory for tpu_custom_call.1']
    %7 = vsyncpa [#allocation3], 0
    // Predicated region
    $region2: #{tpu_custom_call.1} parent=1 // pred_check
      _
    $region3: #{tpu_custom_call.1} parent=1 // pred_check_branch
      %9 = sbr.rel (0) target = $region5
    $region4: #{tpu_custom_call.1} parent=1 // pred_region
      _
    $region5: #{tpu_custom_call.1} parent=1 // pred_fallthru
      _
    // Predicated region
    $region6: #{tpu_custom_call.1} parent=1 // pred_check
      _
    $region7: #{tpu_custom_call.1} parent=1 // pred_check_branch
      %11 = sbr.rel (0) target = $region9
    $region8: #{tpu_custom_call.1} parent=1 // pred_region
      _
    $region9: #{tpu_custom_call.1} parent=1 // pred_fallthru
      _
    %p12 = scmp.eq.s32.totalorder 0, 0
    // Predicated region
    $region10: #{tpu_custom_call.1} parent=1 // pred_check
      %p13 = pneg %p12
    $region11: #{tpu_custom_call.1} parent=1 // pred_check_branch
      %15 = sbr.rel (%p13) target = $region13
    $region12: #{tpu_custom_call.1} parent=1 // pred_region
      %16 = vst [vmem:[#allocation2] sm:$0x3f] 0.0
    $region13: #{tpu_custom_call.1} parent=1 // pred_fallthru
      _
    %s17 = scalar_lea.vmem %s0, 176
    %v18 = vld [vmem:[%s17] sm:$0xff]
    %v19 = vld [vmem:[%s17 + $0x8] sm:$0xf]
    %v20 = vld [vmem:[%s0] sm:$0xff]
    %v21 = vld [vmem:[%s0 + $0x8] sm:$0xf]
    %s22 = scalar_lea.vmem %s0, 80
    %v23 = vld [vmem:[%s22] sm:$0xff]
    %v24 = vld [vmem:[%s22 + $0x8] sm:$0xf]
    %v25 = vsub.f32 %v20, %v23
    %v26 = vsub.f32 %v21, %v24
    %v27 = vmul.f32 %v25, %v18
    %v28 = vmul.f32 %v26, %v19
    %v29 = vld [vmem:[#allocation2] sm:$0x1]
    %v30 = vmul.f32 %v27, %v27
    %v31 = vmul.f32 %v28, %v28
    %vm32 = vcmask 1043456
    %v33 = vsel %vm32, %v31, 0.0
    %v34 = vadd.f32 %v30, %v33
    %v35 = vrot.slane %v34, 4
    %v36 = vadd.f32 %v34, %v35
    %v37 = vrot.slane %v36, 2
    %v38 = vadd.f32 %v36, %v37
    %v39 = vrot.slane %v38, 1
    %v40 = vadd.f32 %v38, %v39
    %v41 = vadd.f32 %v29, %v40
    %42 = vst [vmem:[#allocation2] sm:$0x1] %v41
    %s43 = scalar_lea.vmem %s0, 16
    %v44 = vld [vmem:[%s43] sm:$0xff]
    %v45 = vld [vmem:[%s43 + $0x8] sm:$0xf]
    %s46 = scalar_lea.vmem %s0, 96
    %v47 = vld [vmem:[%s46] sm:$0xff]
    %v48 = vld [vmem:[%s46 + $0x8] sm:$0xf]
    %v49 = vsub.f32 %v44, %v47
    %v50 = vsub.f32 %v45, %v48
    %v51 = vmul.f32 %v49, %v18
    %v52 = vmul.f32 %v50, %v19
    %v53 = vld [vmem:[#allocation2 + $0x1] sm:$0x1]
    %v54 = vmul.f32 %v51, %v51
    %v55 = vmul.f32 %v52, %v52
    %v56 = vsel %vm32, %v55, 0.0
    %v57 = vadd.f32 %v54, %v56
    %v58 = vrot.slane %v57, 4
    %v59 = vadd.f32 %v57, %v58
    %v60 = vrot.slane %v59, 2
    %v61 = vadd.f32 %v59, %v60
    %v62 = vrot.slane %v61, 1
    %v63 = vadd.f32 %v61, %v62
    %v64 = vadd.f32 %v53, %v63
    %65 = vst [vmem:[#allocation2 + $0x1] sm:$0x1] %v64
    %s66 = scalar_lea.vmem %s0, 32
    %v67 = vld [vmem:[%s66] sm:$0xff]
    %v68 = vld [vmem:[%s66 + $0x8] sm:$0xf]
    %s69 = scalar_lea.vmem %s0, 112
    %v70 = vld [vmem:[%s69] sm:$0xff]
    %v71 = vld [vmem:[%s69 + $0x8] sm:$0xf]
    %v72 = vsub.f32 %v67, %v70
    %v73 = vsub.f32 %v68, %v71
    %v74 = vmul.f32 %v72, %v18
    %v75 = vmul.f32 %v73, %v19
    %v76 = vld [vmem:[#allocation2 + $0x2] sm:$0x1]
    %v77 = vmul.f32 %v74, %v74
    %v78 = vmul.f32 %v75, %v75
    %v79 = vsel %vm32, %v78, 0.0
    %v80 = vadd.f32 %v77, %v79
    %v81 = vrot.slane %v80, 4
    %v82 = vadd.f32 %v80, %v81
    %v83 = vrot.slane %v82, 2
    %v84 = vadd.f32 %v82, %v83
    %v85 = vrot.slane %v84, 1
    %v86 = vadd.f32 %v84, %v85
    %v87 = vadd.f32 %v76, %v86
    %88 = vst [vmem:[#allocation2 + $0x2] sm:$0x1] %v87
    %s89 = scalar_lea.vmem %s0, 48
    %v90 = vld [vmem:[%s89] sm:$0xff]
    %v91 = vld [vmem:[%s89 + $0x8] sm:$0xf]
    %s92 = scalar_lea.vmem %s0, 128
    %v93 = vld [vmem:[%s92] sm:$0xff]
    %v94 = vld [vmem:[%s92 + $0x8] sm:$0xf]
    %v95 = vsub.f32 %v90, %v93
    %v96 = vsub.f32 %v91, %v94
    %v97 = vmul.f32 %v95, %v18
    %v98 = vmul.f32 %v96, %v19
    %v99 = vld [vmem:[#allocation2 + $0x3] sm:$0x1]
    %v100 = vmul.f32 %v97, %v97
    %v101 = vmul.f32 %v98, %v98
    %v102 = vsel %vm32, %v101, 0.0
    %v103 = vadd.f32 %v100, %v102
    %v104 = vrot.slane %v103, 4
    %v105 = vadd.f32 %v103, %v104
    %v106 = vrot.slane %v105, 2
    %v107 = vadd.f32 %v105, %v106
    %v108 = vrot.slane %v107, 1
    %v109 = vadd.f32 %v107, %v108
    %v110 = vadd.f32 %v99, %v109
    %111 = vst [vmem:[#allocation2 + $0x3] sm:$0x1] %v110
    %s112 = scalar_lea.vmem %s0, 64
    %v113 = vld [vmem:[%s112] sm:$0xff]
    %v114 = vld [vmem:[%s112 + $0x8] sm:$0xf]
    %s115 = scalar_lea.vmem %s0, 144
    %v116 = vld [vmem:[%s115] sm:$0xff]
    %v117 = vld [vmem:[%s115 + $0x8] sm:$0xf]
    %v118 = vlog2.pop %v113
    %v119 = vmul.f32 %v118, 0.6931472
    %v120 = vlog2.pop %v114
    %v121 = vmul.f32 %v120, 0.6931472
    %v122 = vmax.f32 %v119, -100.0
    %v123 = vmax.f32 %v121, -100.0
    %v124 = vsub.f32 1.0, %v113
    %v125 = vsub.f32 1.0, %v114
    %v126 = vlog2.pop %v124
    %v127 = vmul.f32 %v126, 0.6931472
    %v128 = vlog2.pop %v125
    %v129 = vmul.f32 %v128, 0.6931472
    %v130 = vmax.f32 %v127, -100.0
    %v131 = vmax.f32 %v129, -100.0
    %v132 = vmul.f32 %v116, %v122
    %v133 = vmul.f32 %v117, %v123
    %v134 = vsub.f32 1.0, %v116
    %v135 = vsub.f32 1.0, %v117
    %v136 = vmul.f32 %v134, %v130
    %v137 = vmul.f32 %v135, %v131
    %v138 = vadd.f32 %v132, %v136
    %v139 = vadd.f32 %v133, %v137
    %v140 = vsub.f32 0.0, %v138
    %v141 = vsub.f32 0.0, %v139
    %v142 = vmul.f32 %v18, 0.5
    %v143 = vmul.f32 %v19, 0.5
    %v144 = vadd.f32 %v142, 0.5
    %v145 = vadd.f32 %v143, 0.5
    %v146 = vld [vmem:[#allocation2 + $0x4] sm:$0x1]
    %v147 = vmul.f32 %v144, %v140
    %v148 = vmul.f32 %v145, %v141
    %v149 = vsel %vm32, %v148, 0.0
    %v150 = vadd.f32 %v147, %v149
    %v151 = vrot.slane %v150, 4
    %v152 = vadd.f32 %v150, %v151
    %v153 = vrot.slane %v152, 2
    %v154 = vadd.f32 %v152, %v153
    %v155 = vrot.slane %v154, 1
    %v156 = vadd.f32 %v154, %v155
    %v157 = vadd.f32 %v146, %v156
    %158 = vst [vmem:[#allocation2 + $0x4] sm:$0x1] %v157
    %s159 = scalar_lea.vmem %s0, 160
    %v160 = vld [vmem:[%s159] sm:$0xff]
    %v161 = vld [vmem:[%s159 + $0x8] sm:$0xf]
    %v162 = vmul.f32 %v160, %v18
    %v163 = vmul.f32 %v161, %v19
    %v164 = vcvt.f32.s32.to.zero.pseudo %v162
    %v165 = vcvt.f32.s32.to.zero.pseudo %v163
    %v166 = vld [vmem:[%s1] sm:$0xff]
    %v167 = vld [vmem:[%s1 + $0x8] sm:$0xf]
    %v168 = vmul.f32 %v166, %v18
    %v169 = vmul.f32 %v167, %v19
    %s170 = scalar_lea.vmem %s1, 16
    %v171 = vld [vmem:[%s170] sm:$0xff]
    %v172 = vld [vmem:[%s170 + $0x8] sm:$0xf]
    %v173 = vmul.f32 %v171, %v18
    %v174 = vmul.f32 %v172, %v19
    %v175 = vmax.f32 %v168, %v173
    %v176 = vmax.f32 %v169, %v174
    %s177 = scalar_lea.vmem %s1, 32
    %v178 = vld [vmem:[%s177] sm:$0xff]
    %v179 = vld [vmem:[%s177 + $0x8] sm:$0xf]
    %v180 = vmul.f32 %v178, %v18
    %v181 = vmul.f32 %v179, %v19
    %v182 = vmax.f32 %v175, %v180
    %v183 = vmax.f32 %v176, %v181
    %s184 = scalar_lea.vmem %s1, 48
    %v185 = vld [vmem:[%s184] sm:$0xff]
    %v186 = vld [vmem:[%s184 + $0x8] sm:$0xf]
    %v187 = vmul.f32 %v185, %v18
    %v188 = vmul.f32 %v186, %v19
    %v189 = vmax.f32 %v182, %v187
    %v190 = vmax.f32 %v183, %v188
    %s191 = scalar_lea.vmem %s1, 64
    %v192 = vld [vmem:[%s191] sm:$0xff]
    %v193 = vld [vmem:[%s191 + $0x8] sm:$0xf]
    %v194 = vmul.f32 %v192, %v18
    %v195 = vmul.f32 %v193, %v19
    %v196 = vmax.f32 %v189, %v194
    %v197 = vmax.f32 %v190, %v195
    %s198 = scalar_lea.vmem %s1, 80
    %v199 = vld [vmem:[%s198] sm:$0xff]
    %v200 = vld [vmem:[%s198 + $0x8] sm:$0xf]
    %v201 = vmul.f32 %v199, %v18
    %v202 = vmul.f32 %v200, %v19
    %v203 = vmax.f32 %v196, %v201
    %v204 = vmax.f32 %v197, %v202
    %s205 = scalar_lea.vmem %s1, 96
    %v206 = vld [vmem:[%s205] sm:$0xff]
    %v207 = vld [vmem:[%s205 + $0x8] sm:$0xf]
    %v208 = vmul.f32 %v206, %v18
    %v209 = vmul.f32 %v207, %v19
    %v210 = vmax.f32 %v203, %v208
    %v211 = vmax.f32 %v204, %v209
    %s212 = scalar_lea.vmem %s1, 112
    %v213 = vld [vmem:[%s212] sm:$0xff]
    %v214 = vld [vmem:[%s212 + $0x8] sm:$0xf]
    %v215 = vmul.f32 %v213, %v18
    %v216 = vmul.f32 %v214, %v19
    %v217 = vmax.f32 %v210, %v215
    %v218 = vmax.f32 %v211, %v216
    %v219 = vsub.f32 %v168, %v217
    %v220 = vsub.f32 %v169, %v218
    %v221 = vmul.f32 %v219, 1.442695
    %v222 = vpow.pop %v221
    %v223 = vmul.f32 %v220, 1.442695
    %v224 = vpow.pop %v223
    %v225 = vadd.f32 %v222, 0.0
    %v226 = vadd.f32 %v224, 0.0
    %vm227 = vcmp.eq.s32.totalorder %v164, 0
    %vm228 = vcmp.eq.s32.totalorder %v165, 0
    %v229 = vsel %vm227, %v168, 0.0
    %v230 = vsel %vm228, %v169, 0.0
    %v231 = vadd.f32 %v229, 0.0
    %v232 = vadd.f32 %v230, 0.0
    %v233 = vsub.f32 %v173, %v217
    %v234 = vsub.f32 %v174, %v218
    %v235 = vmul.f32 %v233, 1.442695
    %v236 = vpow.pop %v235
    %v237 = vmul.f32 %v234, 1.442695
    %v238 = vpow.pop %v237
    %v239 = vadd.f32 %v225, %v236
    %v240 = vadd.f32 %v226, %v238
    %vm241 = vcmp.eq.s32.totalorder %v164, 1
    %vm242 = vcmp.eq.s32.totalorder %v165, 1
    %v243 = vsel %vm241, %v173, 0.0
    %v244 = vsel %vm242, %v174, 0.0
    %v245 = vadd.f32 %v231, %v243
    %v246 = vadd.f32 %v232, %v244
    %v247 = vsub.f32 %v180, %v217
    %v248 = vsub.f32 %v181, %v218
    %v249 = vmul.f32 %v247, 1.442695
    %v250 = vpow.pop %v249
    %v251 = vmul.f32 %v248, 1.442695
    %v252 = vpow.pop %v251
    %v253 = vadd.f32 %v239, %v250
    %v254 = vadd.f32 %v240, %v252
    %vm255 = vcmp.eq.s32.totalorder %v164, 2
    %vm256 = vcmp.eq.s32.totalorder %v165, 2
    %v257 = vsel %vm255, %v180, 0.0
    %v258 = vsel %vm256, %v181, 0.0
    %v259 = vadd.f32 %v245, %v257
    %v260 = vadd.f32 %v246, %v258
    %v261 = vsub.f32 %v187, %v217
    %v262 = vsub.f32 %v188, %v218
    %v263 = vmul.f32 %v261, 1.442695
    %v264 = vpow.pop %v263
    %v265 = vmul.f32 %v262, 1.442695
    %v266 = vpow.pop %v265
    %v267 = vadd.f32 %v253, %v264
    %v268 = vadd.f32 %v254, %v266
    %vm269 = vcmp.eq.s32.totalorder %v164, 3
    %vm270 = vcmp.eq.s32.totalorder %v165, 3
    %v271 = vsel %vm269, %v187, 0.0
    %v272 = vsel %vm270, %v188, 0.0
    %v273 = vadd.f32 %v259, %v271
    %v274 = vadd.f32 %v260, %v272
    %v275 = vsub.f32 %v194, %v217
    %v276 = vsub.f32 %v195, %v218
    %v277 = vmul.f32 %v275, 1.442695
    %v278 = vpow.pop %v277
    %v279 = vmul.f32 %v276, 1.442695
    %v280 = vpow.pop %v279
    %v281 = vadd.f32 %v267, %v278
    %v282 = vadd.f32 %v268, %v280
    %vm283 = vcmp.eq.s32.totalorder %v164, 4
    %vm284 = vcmp.eq.s32.totalorder %v165, 4
    %v285 = vsel %vm283, %v194, 0.0
    %v286 = vsel %vm284, %v195, 0.0
    %v287 = vadd.f32 %v273, %v285
    %v288 = vadd.f32 %v274, %v286
    %v289 = vsub.f32 %v201, %v217
    %v290 = vsub.f32 %v202, %v218
    %v291 = vmul.f32 %v289, 1.442695
    %v292 = vpow.pop %v291
    %v293 = vmul.f32 %v290, 1.442695
    %v294 = vpow.pop %v293
    %v295 = vadd.f32 %v281, %v292
    %v296 = vadd.f32 %v282, %v294
    %vm297 = vcmp.eq.s32.totalorder %v164, 5
    %vm298 = vcmp.eq.s32.totalorder %v165, 5
    %v299 = vsel %vm297, %v201, 0.0
    %v300 = vsel %vm298, %v202, 0.0
    %v301 = vadd.f32 %v287, %v299
    %v302 = vadd.f32 %v288, %v300
    %v303 = vsub.f32 %v208, %v217
    %v304 = vsub.f32 %v209, %v218
    %v305 = vmul.f32 %v303, 1.442695
    %v306 = vpow.pop %v305
    %v307 = vmul.f32 %v304, 1.442695
    %v308 = vpow.pop %v307
    %v309 = vadd.f32 %v295, %v306
    %v310 = vadd.f32 %v296, %v308
    %vm311 = vcmp.eq.s32.totalorder %v164, 6
    %vm312 = vcmp.eq.s32.totalorder %v165, 6
    %v313 = vsel %vm311, %v208, 0.0
    %v314 = vsel %vm312, %v209, 0.0
    %v315 = vadd.f32 %v301, %v313
    %v316 = vadd.f32 %v302, %v314
    %v317 = vsub.f32 %v215, %v217
    %v318 = vsub.f32 %v216, %v218
    %v319 = vmul.f32 %v317, 1.442695
    %v320 = vpow.pop %v319
    %v321 = vmul.f32 %v318, 1.442695
    %v322 = vpow.pop %v321
    %v323 = vadd.f32 %v309, %v320
    %v324 = vadd.f32 %v310, %v322
    %vm325 = vcmp.eq.s32.totalorder %v164, 7
    %vm326 = vcmp.eq.s32.totalorder %v165, 7
    %v327 = vsel %vm325, %v215, 0.0
    %v328 = vsel %vm326, %v216, 0.0
    %v329 = vadd.f32 %v315, %v327
    %v330 = vadd.f32 %v316, %v328
    %v331 = vlog2.pop %v323
    %v332 = vmul.f32 %v331, 0.6931472
    %v333 = vlog2.pop %v324
    %v334 = vmul.f32 %v333, 0.6931472
    %v335 = vadd.f32 %v217, %v332
    %v336 = vadd.f32 %v218, %v334
    %v337 = vld [vmem:[#allocation2 + $0x5] sm:$0x1]
    %v338 = vsub.f32 %v335, %v329
    %v339 = vsub.f32 %v336, %v330
    %v340 = vsel %vm32, %v339, 0.0
    %v341 = vadd.f32 %v338, %v340
    %v342 = vrot.slane %v341, 4
    %v343 = vadd.f32 %v341, %v342
    %v344 = vrot.slane %v343, 2
    %v345 = vadd.f32 %v343, %v344
    %v346 = vrot.slane %v345, 1
    %v347 = vadd.f32 %v345, %v346
    %v348 = vadd.f32 %v337, %v347
    %349 = vst [vmem:[#allocation2 + $0x5] sm:$0x1] %v348
    // Predicated region
    $region14: #{tpu_custom_call.1} parent=1 // pred_check
      _
    $region15: #{tpu_custom_call.1} parent=1 // pred_check_branch
      %351 = sbr.rel (0) target = $region17
    $region16: #{tpu_custom_call.1} parent=1 // pred_region
      %s353 = ssub.s32 128, 128
      %354 = vsyncadd [#allocation3], %s353
      %s356 = sshll.u32 [#allocation2], 4
      %s357 = int_to_ptr.vmem [resolvable:$true] %s356
      %359 = dma.vmem_to_hbm [thread:$0]  %s357, 128, %s2, [#allocation3]
    $region17: #{tpu_custom_call.1} parent=1 // pred_fallthru
      _
    // Predicated region
    $region18: #{tpu_custom_call.1} parent=1 // pred_check
      _
    $region19: #{tpu_custom_call.1} parent=1 // pred_check_branch
      %361 = sbr.rel (0) target = $region21
    $region20: #{tpu_custom_call.1} parent=1 // pred_region
      %362 = dma.done [#allocation3], 128
    $region21: #{tpu_custom_call.1} parent=1 // pred_fallthru
      _
    %363 = vsyncpa [#allocation3], 1

</llo_original>
